<compile_context>
chip_gen: v6e
topology: v6e:2x2x1
jax: 0.10.0
libtpu: 0.0.40
codegen_flags: <defaults>
</compile_context>

<pallas_src>
import functools

import jax
import jax.numpy as jnp
from jax.experimental import pallas as pl
from jax.experimental.pallas import tpu as pltpu


def _round_up(n, m):
    return -(-n // m) * m


# ----------------------------------------------------------------------------
# Fused kernel: whole MLP forward on one batch tile.
#   layer_specs: tuple of (row_offset, d_in, d_out) into the weight slab.
#   refs: x_ref (blk_b, in_dim) f32, w_ref (R, C) bf16 weight slab,
#         b_ref (L, C) f32 bias slab, o_ref (blk_b, out_dim) f32.
# ----------------------------------------------------------------------------
def _net_fused_kernel(layer_specs, act, x_ref, w_ref, b_ref, o_ref):
    n_layers = len(layer_specs)
    b_all = b_ref[...]                        # (L, C) f32, tiny; loaded once
    x = x_ref[...].astype(jnp.bfloat16)       # inter-layer activations stay bf16

    for j, (roff, d_in, d_out) in enumerate(layer_specs):
        w = w_ref[roff:roff + d_in, :d_out]   # static slice of the bf16 slab
        acc = jnp.dot(x, w, preferred_element_type=jnp.float32)
        acc = acc + b_all[j:j + 1, :d_out]    # f32 bias add
        if j < n_layers - 1:                  # hidden layers get the activation
            h = jnp.tanh(acc) if act == "tanh" else jnp.maximum(acc, 0.0)
            x = h.astype(jnp.bfloat16)
        else:
            # Dropout(p=fdrop) sits between the last hidden activation and the
            # final Linear; identity for fdrop=0 / eval mode.
            # TODO(synk): train-mode dropout (p>0) not implemented.
            x = acc

    o_ref[...] = x.astype(o_ref.dtype)


# ----------------------------------------------------------------------------
# Wrapper: single fused pallas_call.  normalize / de-normalize are already
# folded into the packed weights, so only (x, w_slab, b_slab) enter the call.
# ----------------------------------------------------------------------------
def net_forward(w_slab, b_slab, x, *, layer_specs, act="tanh", tile_b=None):
    if isinstance(x, tuple):                  # matches `if type(X) is tuple: X = X[0]`
        x = x[0]
    B, in_dim = x.shape
    out_dim = layer_specs[-1][2]

    # Batch tiling: default is ONE whole-batch block (no sequential grid
    # steps).  Only tile when tile_b cleanly divides a larger batch, e.g.
    # tile_b=B//2 for the two TensorCores on v7x, or 256-512 rows for huge B.
    if tile_b is not None and tile_b % 8 == 0 and B > tile_b and B % tile_b == 0:
        nb, blk = B // tile_b, tile_b
    else:
        nb, blk = 1, B

    flops = 2 * B * sum(di * do for _, di, do in layer_specs)
    transcendentals = (B * sum(do for _, _, do in layer_specs[:-1])
                       if act == "tanh" else 0)
    bytes_accessed = (x.size * x.dtype.itemsize
                      + w_slab.size * w_slab.dtype.itemsize
                      + b_slab.size * b_slab.dtype.itemsize
                      + B * out_dim * 4)

    kernel = functools.partial(_net_fused_kernel, layer_specs, act)
    return pl.pallas_call(
        kernel,
        grid=(nb,),
        in_specs=[
            pl.BlockSpec((blk, in_dim), lambda i: (i, 0)),
            pl.BlockSpec(w_slab.shape, lambda i: (0, 0)),   # whole slab, fetched once
            pl.BlockSpec(b_slab.shape, lambda i: (0, 0)),   # whole slab, fetched once
        ],
        out_specs=pl.BlockSpec((blk, out_dim), lambda i: (i, 0)),
        out_shape=jax.ShapeDtypeStruct((B, out_dim), jnp.float32),
        compiler_params=pltpu.CompilerParams(dimension_semantics=("parallel",)),
        cost_estimate=pl.CostEstimate(flops=flops,
                                      transcendentals=transcendentals,
                                      bytes_accessed=bytes_accessed),
    )(x, w_slab, b_slab)


# ----------------------------------------------------------------------------
# Raw parameters: PyTorch-default Linear init, (in, out) layout, f32.
# ----------------------------------------------------------------------------
def init_params(key, in_dim, uvec, out_dim):
    dims = [in_dim] + list(uvec) + [out_dim]
    keys = jax.random.split(key, 2 * (len(dims) - 1))
    layers = []
    for j in range(len(dims) - 1):
        fan_in, fan_out = dims[j], dims[j + 1]
        s = 1.0 / (fan_in ** 0.5)
        W = jax.random.uniform(keys[2 * j], (fan_in, fan_out), jnp.float32, -s, s)
        b = jax.random.uniform(keys[2 * j + 1], (1, fan_out), jnp.float32, -s, s)
        layers.append((W, b))
    return layers


# ----------------------------------------------------------------------------
# Prepare: fold normalize/denorm into first/last layer (in f32), then pack all
# weights into one bf16 slab + all biases into one f32 slab.  Done ONCE.
# ----------------------------------------------------------------------------
def prepare_params(raw_layers, *, bounds, normalize=True):
    lb, ub, ylb, yub = (float(v) for v in bounds)
    Ws = [jnp.asarray(W, jnp.float32) for W, _ in raw_layers]
    bs = [jnp.asarray(b, jnp.float32).reshape(1, -1) for _, b in raw_layers]

    if normalize:
        # Input norm  x' = a*x + c  folded into layer 0.
        a = 2.0 / (ub - lb)
        c = -2.0 * lb / (ub - lb) - 1.0
        bs[0] = bs[0] + c * jnp.sum(Ws[0], axis=0, keepdims=True)
        Ws[0] = a * Ws[0]
        # Output denorm  y' = s*y + (s + ylb)  folded into the last layer.
        s = 0.5 * (yub - ylb)
        bs[-1] = s * bs[-1] + (s + ylb)
        Ws[-1] = s * Ws[-1]

    c_max = max(W.shape[1] for W in Ws)
    roffs, r = [], 0
    for W in Ws:
        roffs.append(r)
        r += _round_up(W.shape[0], 8)         # sublane-aligned layer blocks
    r_total = _round_up(r, 8)

    w_slab = jnp.zeros((r_total, c_max), jnp.float32)
    b_slab = jnp.zeros((len(Ws), c_max), jnp.float32)
    for j, (W, b) in enumerate(zip(Ws, bs)):
        w_slab = w_slab.at[roffs[j]:roffs[j] + W.shape[0], :W.shape[1]].set(W)
        b_slab = b_slab.at[j, :b.shape[1]].set(b[0])

    layer_specs = tuple((roffs[j], Ws[j].shape[0], Ws[j].shape[1])
                        for j in range(len(Ws)))
    return w_slab.astype(jnp.bfloat16), b_slab, layer_specs


# ----------------------------------------------------------------------------
# Pure-JAX f32 reference (exact PyTorch semantics, unfused weights).
# ----------------------------------------------------------------------------
def net_reference(raw_layers, x, *, bounds, act="tanh", normalize=True):
    lb, ub, ylb, yub = (float(v) for v in bounds)
    h = x
    if normalize:
        h = 2.0 * (h - lb) / (ub - lb) - 1.0
    for j, (W, b) in enumerate(raw_layers):
        h = h @ W + b
        if j < len(raw_layers) - 1:
            h = jnp.tanh(h) if act == "tanh" else jnp.maximum(h, 0.0)
    if normalize:
        h = 0.5 * ((h + 1.0) * (yub - ylb)) + ylb
    return h


if __name__ == "__main__":
    key = jax.random.PRNGKey(0)
    pkey, xkey1, xkey2 = jax.random.split(key, 3)

    # Config consistent with the module's constructor:
    # Uvec=[40]*5, iovec=[in_dim, out_dim], act='tanh', normalize=True, fdrop=0.
    IN_DIM, OUT_DIM, UVEC = 4, 2, [40] * 5
    BOUNDS = (-2.0, 2.0, -1.0, 3.0)            # (lb, ub, ylb, yub)

    raw = init_params(pkey, IN_DIM, UVEC, OUT_DIM)
    w_slab, b_slab, layer_specs = prepare_params(raw, bounds=BOUNDS, normalize=True)

    # Case 1: small batch -> single whole-batch block (no grid splitting).
    B1 = 64
    x1 = jax.random.uniform(xkey1, (B1, IN_DIM), jnp.float32, -2.0, 2.0)
    fwd1 = jax.jit(functools.partial(net_forward, layer_specs=layer_specs,
                                     act="tanh", tile_b=None))
    out1 = jax.block_until_ready(fwd1(w_slab, b_slab, x1))
    ref1 = net_reference(raw, x1, bounds=BOUNDS, act="tanh", normalize=True)
    assert out1.shape == (B1, OUT_DIM), out1.shape
    assert bool(jnp.all(jnp.isfinite(out1)))
    err1 = float(jnp.max(jnp.abs(out1 - ref1)))
    assert err1 < 5e-2, f"case1 max abs error vs f32 reference: {err1}"

    # Case 2: larger batch tiled into 2 parallel 256-row blocks
    # (megacore split on v7x; the large-batch tiling path elsewhere).
    B2, TILE = 512, 256
    x2 = jax.random.uniform(xkey2, (B2, IN_DIM), jnp.float32, -2.0, 2.0)
    fwd2 = jax.jit(functools.partial(net_forward, layer_specs=layer_specs,
                                     act="tanh", tile_b=TILE))
    out2 = jax.block_until_ready(fwd2(w_slab, b_slab, x2))
    ref2 = net_reference(raw, x2, bounds=BOUNDS, act="tanh", normalize=True)
    assert out2.shape == (B2, OUT_DIM), out2.shape
    assert bool(jnp.all(jnp.isfinite(out2)))
    err2 = float(jnp.max(jnp.abs(out2 - ref2)))
    assert err2 < 5e-2, f"case2 max abs error vs f32 reference: {err2}"

    print("KERNEL_OK")
</pallas_src>

<mosaic_0001>
module attributes {stable_mosaic.version = 11 : i64} {
  func.func @_net_fused_kernel(%arg0: i32, %arg1: memref<64x4xf32, #tpu.memory_space<vmem>>, %arg2: memref<208x40xbf16, #tpu.memory_space<vmem>>, %arg3: memref<6x40xf32, #tpu.memory_space<vmem>>, %arg4: memref<64x2xf32, #tpu.memory_space<vmem>>) attributes {dimension_semantics = [#tpu.dimension_semantics<parallel>], iteration_bounds = array<i64: 1>, scalar_prefetch = 0 : i64, scratch_operands = 0 : i64, tpu.core_type = #tpu.core_type<tc>, window_params = [{transform_indices = @transform_0, window_bounds = array<i64: 64, 4>}, {pipeline_mode = #tpu.pipeline_mode<synchronous>, transform_indices = @transform_1, window_bounds = array<i64: 208, 40>}, {pipeline_mode = #tpu.pipeline_mode<synchronous>, transform_indices = @transform_2, window_bounds = array<i64: 6, 40>}, {transform_indices = @transform_3, window_bounds = array<i64: 64, 2>}]} {
    %c0 = arith.constant 0 : index
    %c0_0 = arith.constant 0 : index
    %0 = vector.load %arg3[%c0, %c0_0] : memref<6x40xf32, #tpu.memory_space<vmem>>, vector<6x40xf32>
    %c0_1 = arith.constant 0 : index
    %c0_2 = arith.constant 0 : index
    %1 = vector.load %arg1[%c0_1, %c0_2] : memref<64x4xf32, #tpu.memory_space<vmem>>, vector<64x4xf32>
    %2 = arith.truncf %1 : vector<64x4xf32> to vector<64x4xbf16>
    %c0_3 = arith.constant 0 : index
    %c0_4 = arith.constant 0 : index
    %3 = vector.load %arg2[%c0_3, %c0_4] : memref<208x40xbf16, #tpu.memory_space<vmem>>, vector<4x40xbf16>
    %cst = arith.constant dense<0.000000e+00> : vector<64x40xf32>
    %4 = tpu.matmul %2, %3, %cst {dimension_numbers = #tpu.dot_dimension_numbers<[1], [0], [0], [1], [0, 0, 1, 1], [], []>} : vector<64x4xbf16>, vector<4x40xbf16>, vector<64x40xf32> -> vector<64x40xf32>
    %5 = vector.extract_strided_slice %0 {offsets = [0, 0], sizes = [1, 40], strides = [1, 1]} : vector<6x40xf32> to vector<1x40xf32>
    %6 = vector.broadcast %5 : vector<1x40xf32> to vector<64x40xf32>
    %7 = arith.addf %4, %6 : vector<64x40xf32>
    %8 = math.tanh %7 : vector<64x40xf32>
    %9 = arith.truncf %8 : vector<64x40xf32> to vector<64x40xbf16>
    %c8 = arith.constant 8 : index
    %c0_5 = arith.constant 0 : index
    %10 = vector.load %arg2[%c8, %c0_5] : memref<208x40xbf16, #tpu.memory_space<vmem>>, vector<40x40xbf16>
    %cst_6 = arith.constant dense<0.000000e+00> : vector<64x40xf32>
    %11 = tpu.matmul %9, %10, %cst_6 {dimension_numbers = #tpu.dot_dimension_numbers<[1], [0], [0], [1], [0, 0, 1, 1], [], []>} : vector<64x40xbf16>, vector<40x40xbf16>, vector<64x40xf32> -> vector<64x40xf32>
    %12 = vector.extract_strided_slice %0 {offsets = [1, 0], sizes = [1, 40], strides = [1, 1]} : vector<6x40xf32> to vector<1x40xf32>
    %13 = vector.broadcast %12 : vector<1x40xf32> to vector<64x40xf32>
    %14 = arith.addf %11, %13 : vector<64x40xf32>
    %15 = math.tanh %14 : vector<64x40xf32>
    %16 = arith.truncf %15 : vector<64x40xf32> to vector<64x40xbf16>
    %c48 = arith.constant 48 : index
    %c0_7 = arith.constant 0 : index
    %17 = vector.load %arg2[%c48, %c0_7] : memref<208x40xbf16, #tpu.memory_space<vmem>>, vector<40x40xbf16>
    %cst_8 = arith.constant dense<0.000000e+00> : vector<64x40xf32>
    %18 = tpu.matmul %16, %17, %cst_8 {dimension_numbers = #tpu.dot_dimension_numbers<[1], [0], [0], [1], [0, 0, 1, 1], [], []>} : vector<64x40xbf16>, vector<40x40xbf16>, vector<64x40xf32> -> vector<64x40xf32>
    %19 = vector.extract_strided_slice %0 {offsets = [2, 0], sizes = [1, 40], strides = [1, 1]} : vector<6x40xf32> to vector<1x40xf32>
    %20 = vector.broadcast %19 : vector<1x40xf32> to vector<64x40xf32>
    %21 = arith.addf %18, %20 : vector<64x40xf32>
    %22 = math.tanh %21 : vector<64x40xf32>
    %23 = arith.truncf %22 : vector<64x40xf32> to vector<64x40xbf16>
    %c88 = arith.constant 88 : index
    %c0_9 = arith.constant 0 : index
    %24 = vector.load %arg2[%c88, %c0_9] : memref<208x40xbf16, #tpu.memory_space<vmem>>, vector<40x40xbf16>
    %cst_10 = arith.constant dense<0.000000e+00> : vector<64x40xf32>
    %25 = tpu.matmul %23, %24, %cst_10 {dimension_numbers = #tpu.dot_dimension_numbers<[1], [0], [0], [1], [0, 0, 1, 1], [], []>} : vector<64x40xbf16>, vector<40x40xbf16>, vector<64x40xf32> -> vector<64x40xf32>
    %26 = vector.extract_strided_slice %0 {offsets = [3, 0], sizes = [1, 40], strides = [1, 1]} : vector<6x40xf32> to vector<1x40xf32>
    %27 = vector.broadcast %26 : vector<1x40xf32> to vector<64x40xf32>
    %28 = arith.addf %25, %27 : vector<64x40xf32>
    %29 = math.tanh %28 : vector<64x40xf32>
    %30 = arith.truncf %29 : vector<64x40xf32> to vector<64x40xbf16>
    %c128 = arith.constant 128 : index
    %c0_11 = arith.constant 0 : index
    %31 = vector.load %arg2[%c128, %c0_11] : memref<208x40xbf16, #tpu.memory_space<vmem>>, vector<40x40xbf16>
    %cst_12 = arith.constant dense<0.000000e+00> : vector<64x40xf32>
    %32 = tpu.matmul %30, %31, %cst_12 {dimension_numbers = #tpu.dot_dimension_numbers<[1], [0], [0], [1], [0, 0, 1, 1], [], []>} : vector<64x40xbf16>, vector<40x40xbf16>, vector<64x40xf32> -> vector<64x40xf32>
    %33 = vector.extract_strided_slice %0 {offsets = [4, 0], sizes = [1, 40], strides = [1, 1]} : vector<6x40xf32> to vector<1x40xf32>
    %34 = vector.broadcast %33 : vector<1x40xf32> to vector<64x40xf32>
    %35 = arith.addf %32, %34 : vector<64x40xf32>
    %36 = math.tanh %35 : vector<64x40xf32>
    %37 = arith.truncf %36 : vector<64x40xf32> to vector<64x40xbf16>
    %c168 = arith.constant 168 : index
    %c0_13 = arith.constant 0 : index
    %38 = vector.load %arg2[%c168, %c0_13] : memref<208x40xbf16, #tpu.memory_space<vmem>>, vector<40x2xbf16>
    %cst_14 = arith.constant dense<0.000000e+00> : vector<64x2xf32>
    %39 = tpu.matmul %37, %38, %cst_14 {dimension_numbers = #tpu.dot_dimension_numbers<[1], [0], [0], [1], [0, 0, 1, 1], [], []>} : vector<64x40xbf16>, vector<40x2xbf16>, vector<64x2xf32> -> vector<64x2xf32>
    %40 = vector.extract_strided_slice %0 {offsets = [5, 0], sizes = [1, 2], strides = [1, 1]} : vector<6x40xf32> to vector<1x2xf32>
    %41 = vector.broadcast %40 : vector<1x2xf32> to vector<64x2xf32>
    %42 = arith.addf %39, %41 : vector<64x2xf32>
    %c0_15 = arith.constant 0 : index
    %c0_16 = arith.constant 0 : index
    %43 = vector.load %arg4[%c0_15, %c0_16] : memref<64x2xf32, #tpu.memory_space<vmem>>, vector<64x2xf32>
    tpu.vector_store %arg4[%c0_15, %c0_16], %42 {strides = array<i32>} : memref<64x2xf32, #tpu.memory_space<vmem>>, vector<64x2xf32>,
    return
  }
  func.func @transform_0(%arg0: i32) -> (i32, i32) {
    %c0_i32 = arith.constant 0 : i32
    %c0_i32_0 = arith.constant 0 : i32
    return %arg0, %c0_i32 : i32, i32
  }
  func.func @transform_1(%arg0: i32) -> (i32, i32) {
    %c0_i32 = arith.constant 0 : i32
    %c0_i32_0 = arith.constant 0 : i32
    %c0_i32_1 = arith.constant 0 : i32
    return %c0_i32, %c0_i32_0 : i32, i32
  }
  func.func @transform_2(%arg0: i32) -> (i32, i32) {
    %c0_i32 = arith.constant 0 : i32
    %c0_i32_0 = arith.constant 0 : i32
    %c0_i32_1 = arith.constant 0 : i32
    return %c0_i32, %c0_i32_0 : i32, i32
  }
  func.func @transform_3(%arg0: i32) -> (i32, i32) {
    %c0_i32 = arith.constant 0 : i32
    %c0_i32_0 = arith.constant 0 : i32
    return %arg0, %c0_i32 : i32, i32
  }
}

</mosaic_0001>

<llo_original>
// kernel: net_forward.1
$region0: #{net_forward.1}
  #allocation0 [shape = 'u32[]', space=smem, size = 0x4, offset = 0x4, fixed_abs, tag = 'smem constant byte address 0x4 - core index']
  #allocation1 [shape = 'u32[144,128]{1,0:T(1,128)}', space=vmem, size = 0x12000, scoped, tag = 'internal scratch']
  %s0 = inlined_call_operand.vmem [shape: f32[64,4], index: 0, kind: input, shape index: {}]
  %s1 = inlined_call_operand.vmem [shape: bf16[208,40], index: 1, kind: input, shape index: {}]
  %s2 = inlined_call_operand.vmem [shape: f32[6,40], index: 2, kind: input, shape index: {}]
  %s3 = inlined_call_operand.vmem [shape: f32[64,2], index: 3, kind: output, shape index: {}]
  %s4 = sld [smem:[#allocation0]]
  $region22: #{net_forward.1} parent=0
    _
  %s6 = ssub.s32 1, %s4
  %s7 = scalar_select 0, %s6, %s4
  // Predicated region
  $region2: #{net_forward.1} parent=0 // pred_check
    _
  $region3: #{net_forward.1} parent=0 // pred_check_branch
    %9 = sbr.rel (0) target = $region5
  $region4: #{net_forward.1} parent=0 // pred_region
    _
  $region5: #{net_forward.1} parent=0 // pred_fallthru
    _
  // Predicated region
  $region6: #{net_forward.1} parent=0 // pred_check
    _
  $region7: #{net_forward.1} parent=0 // pred_check_branch
    %11 = sbr.rel (0) target = $region9
  $region8: #{net_forward.1} parent=0 // pred_region
    _
  $region9: #{net_forward.1} parent=0 // pred_fallthru
    _
  // Predicated region
  $region10: #{net_forward.1} parent=0 // pred_check
    _
  $region11: #{net_forward.1} parent=0 // pred_check_branch
    %13 = sbr.rel (0) target = $region13
  $region12: #{net_forward.1} parent=0 // pred_region
    _
  $region13: #{net_forward.1} parent=0 // pred_fallthru
    _
  %v15 = vld [vmem:[%s2] sm:$0x3f]
  %v16 = vld [vmem:[%s0] sm:$0xff]
  %v17 = vld [vmem:[%s0 + $0x8] sm:$0xff]
  %v18 = vld [vmem:[%s0 + $0x10] sm:$0xff]
  %v19 = vld [vmem:[%s0 + $0x18] sm:$0xff]
  %v20 = vld [vmem:[%s0 + $0x20] sm:$0xff]
  %v21 = vld [vmem:[%s0 + $0x28] sm:$0xff]
  %v22 = vld [vmem:[%s0 + $0x30] sm:$0xff]
  %v23 = vld [vmem:[%s0 + $0x38] sm:$0xff]
  %v24 = vpack.c.bf16 %v17, %v16
  %v25 = vpack.c.bf16 %v19, %v18
  %v26 = vpack.c.bf16 %v21, %v20
  %v27 = vpack.c.bf16 %v23, %v22
  %v28 = vld [vmem:[%s1] sm:$0x3]
  %v29 = vlaneseq
  %v30 = vshrl.u32 %v29, 7
  %v31 = vsub.s32 0, %v30
  %v32 = vrot.slane %v15, %v31
  %vm33 = vcmask 31744
  %v35 = vsel %vm33, %v24, 0
  %v38 = vsel %vm33, %v25, 0
  %v41 = vsel %vm33, %v26, 0
  %v44 = vsel %vm33, %v27, 0
  %vm46 = vcmask 1041408
  %v48 = vsel %vm46, %v28, 0
  %50 = vmatprep.subr.bf16.mxu0 0
  %51 = vmatpush1.bf16.msra.mxu0 0
  %52 = vmatprep.subr.bf16.mxu0 0
  %53 = vmatpush1.bf16.msra.mxu0 0
  %54 = vmatprep.subr.bf16.mxu0 0
  %55 = vmatpush1.bf16.msra.mxu0 0
  %56 = vmatprep.subr.bf16.mxu0 0
  %57 = vmatpush1.bf16.msra.mxu0 0
  %58 = vmatprep.subr.bf16.mxu0 0
  %59 = vmatpush1.bf16.msra.mxu0 0
  %60 = vmatprep.subr.bf16.mxu0 0
  %61 = vmatpush1.bf16.msra.mxu0 0
  %62 = vmatprep.subr.bf16.mxu0 0
  %63 = vmatpush1.bf16.msra.mxu0 0
  %64 = vmatprep.subr.bf16.mxu0 0
  %65 = vmatpush1.bf16.msra.mxu0 %v48
  %66 = vmatprep.subr.bf16.mxu0 0
  %67 = vmatpush2.bf16.msra.mxu0 0
  %68 = vmatprep.subr.bf16.mxu0 0
  %69 = vmatpush2.bf16.msra.mxu0 0
  %70 = vmatprep.subr.bf16.mxu0 0
  %71 = vmatpush2.bf16.msra.mxu0 0
  %72 = vmatprep.subr.bf16.mxu0 0
  %73 = vmatpush2.bf16.msra.mxu0 0
  %74 = vmatprep.subr.bf16.mxu0 0
  %75 = vmatpush2.bf16.msra.mxu0 0
  %76 = vmatprep.subr.bf16.mxu0 0
  %77 = vmatpush2.bf16.msra.mxu0 0
  %78 = vmatprep.subr.bf16.mxu0 0
  %79 = vmatpush2.bf16.msra.mxu0 0
  %80 = vmatprep.subr.bf16.mxu0 0
  %81 = vmatpush2.bf16.msra.mxu0 0
  %82 = vmatprep.mubr.bf16.mxu0 0
  %83 = vmatmul.mubr.bf16.gmra.mxu0 %v35
  %v84 = vpop.f32.mrf.mxu0
  %v85 = vadd.f32 %v32, %v84
  %v86 = vpop.f32.mrf.mxu0
  %v87 = vpop.f32.mrf.mxu0
  %v88 = vadd.f32 %v32, %v87
  %v89 = vpop.f32.mrf.mxu0
  %90 = vmatprep.mubr.bf16.mxu0 0
  %91 = vmatmul.mubr.bf16.gmra.mxu0 %v38
  %v92 = vpop.f32.mrf.mxu0
  %v93 = vadd.f32 %v32, %v92
  %v94 = vpop.f32.mrf.mxu0
  %v95 = vpop.f32.mrf.mxu0
  %v96 = vadd.f32 %v32, %v95
  %v97 = vpop.f32.mrf.mxu0
  %98 = vmatprep.mubr.bf16.mxu0 0
  %99 = vmatmul.mubr.bf16.gmra.mxu0 %v41
  %v100 = vpop.f32.mrf.mxu0
  %v101 = vadd.f32 %v32, %v100
  %v102 = vpop.f32.mrf.mxu0
  %v103 = vpop.f32.mrf.mxu0
  %v104 = vadd.f32 %v32, %v103
  %v105 = vpop.f32.mrf.mxu0
  %106 = vmatprep.mubr.bf16.mxu0 0
  %107 = vmatmul.mubr.bf16.gmra.mxu0 %v44
  %v108 = vpop.f32.mrf.mxu0
  %v109 = vadd.f32 %v32, %v108
  %v110 = vpop.f32.mrf.mxu0
  %v111 = vpop.f32.mrf.mxu0
  %v112 = vadd.f32 %v32, %v111
  %v113 = vpop.f32.mrf.mxu0
  %114 = vdwg.mxu0
  %v115 = vtanh.pop %v85
  %v116 = vtanh.pop %v88
  %v117 = vtanh.pop %v93
  %v118 = vtanh.pop %v96
  %v119 = vtanh.pop %v101
  %v120 = vtanh.pop %v104
  %v121 = vtanh.pop %v109
  %v122 = vtanh.pop %v112
  %v123 = vpack.c.bf16 %v116, %v115
  %v124 = vpack.c.bf16 %v118, %v117
  %v125 = vpack.c.bf16 %v120, %v119
  %v126 = vpack.c.bf16 %v122, %v121
  %v127 = vld [vmem:[%s1 + $0x4] sm:$0xf]
  %v128 = vld [vmem:[%s1 + $0x8] sm:$0xf]
  %v129 = vld [vmem:[%s1 + $0xc] sm:$0xf]
  %v130 = vld [vmem:[%s1 + $0x10] sm:$0xf]
  %v131 = vld [vmem:[%s1 + $0x14] sm:$0xf]
  %v132 = vlaneseq
  %v133 = vshrl.u32 %v132, 7
  %v134 = vsub.s32 1, %v133
  %v135 = vrot.slane %v15, %v134
  %v141 = vunpack.c.l.b16 %v127
  %v142 = vunpack.c.l.b16 %v128
  %v143 = vunpack.c.l.b16 %v129
  %v144 = vunpack.c.l.b16 %v130
  %v145 = vunpack.c.l.b16 %v131
  %v146 = vpack.c.b16 %v142, %v141
  %v147 = vpack.c.b16 %v144, %v143
  %v148 = vpack.c.b16 %v145, %v145
  %vm151 = vcmask 326656
  %v153 = vsel %vm151, %v123, 0
  %v156 = vsel %vm151, %v124, 0
  %v159 = vsel %vm151, %v125, 0
  %v162 = vsel %vm151, %v126, 0
  %vm164 = vcmask 1043456
  %v166 = vsel %vm164, %v148, 0
  %168 = vmatprep.subr.bf16.mxu0 0
  %169 = vmatpush1.bf16.msra.mxu0 0
  %170 = vmatprep.subr.bf16.mxu0 0
  %171 = vmatpush1.bf16.msra.mxu0 0
  %172 = vmatprep.subr.bf16.mxu0 0
  %173 = vmatpush1.bf16.msra.mxu0 0
  %174 = vmatprep.subr.bf16.mxu0 0
  %175 = vmatpush1.bf16.msra.mxu0 0
  %176 = vmatprep.subr.bf16.mxu0 0
  %177 = vmatpush1.bf16.msra.mxu0 0
  %178 = vmatprep.subr.bf16.mxu0 0
  %179 = vmatpush1.bf16.msra.mxu0 %v166
  %180 = vmatprep.subr.bf16.mxu0 0
  %181 = vmatpush1.bf16.msra.mxu0 %v147
  %182 = vmatprep.subr.bf16.mxu0 0
  %183 = vmatpush1.bf16.msra.mxu0 %v146
  %184 = vmatprep.subr.bf16.mxu0 0
  %185 = vmatpush2.bf16.msra.mxu0 0
  %186 = vmatprep.subr.bf16.mxu0 0
  %187 = vmatpush2.bf16.msra.mxu0 0
  %188 = vmatprep.subr.bf16.mxu0 0
  %189 = vmatpush2.bf16.msra.mxu0 0
  %190 = vmatprep.subr.bf16.mxu0 0
  %191 = vmatpush2.bf16.msra.mxu0 0
  %192 = vmatprep.subr.bf16.mxu0 0
  %193 = vmatpush2.bf16.msra.mxu0 0
  %194 = vmatprep.subr.bf16.mxu0 0
  %195 = vmatpush2.bf16.msra.mxu0 0
  %196 = vmatprep.subr.bf16.mxu0 0
  %197 = vmatpush2.bf16.msra.mxu0 0
  %198 = vmatprep.subr.bf16.mxu0 0
  %199 = vmatpush2.bf16.msra.mxu0 0
  %200 = vmatprep.mubr.bf16.mxu0 0
  %201 = vmatmul.mubr.bf16.gmra.mxu0 %v153
  %v202 = vpop.f32.mrf.mxu0
  %v203 = vadd.f32 %v135, %v202
  %v204 = vpop.f32.mrf.mxu0
  %v205 = vpop.f32.mrf.mxu0
  %v206 = vadd.f32 %v135, %v205
  %v207 = vpop.f32.mrf.mxu0
  %208 = vmatprep.mubr.bf16.mxu0 0
  %209 = vmatmul.mubr.bf16.gmra.mxu0 %v156
  %v210 = vpop.f32.mrf.mxu0
  %v211 = vadd.f32 %v135, %v210
  %v212 = vpop.f32.mrf.mxu0
  %v213 = vpop.f32.mrf.mxu0
  %v214 = vadd.f32 %v135, %v213
  %v215 = vpop.f32.mrf.mxu0
  %216 = vmatprep.mubr.bf16.mxu0 0
  %217 = vmatmul.mubr.bf16.gmra.mxu0 %v159
  %v218 = vpop.f32.mrf.mxu0
  %v219 = vadd.f32 %v135, %v218
  %v220 = vpop.f32.mrf.mxu0
  %v221 = vpop.f32.mrf.mxu0
  %v222 = vadd.f32 %v135, %v221
  %v223 = vpop.f32.mrf.mxu0
  %224 = vmatprep.mubr.bf16.mxu0 0
  %225 = vmatmul.mubr.bf16.gmra.mxu0 %v162
  %v226 = vpop.f32.mrf.mxu0
  %v227 = vadd.f32 %v135, %v226
  %v228 = vpop.f32.mrf.mxu0
  %v229 = vpop.f32.mrf.mxu0
  %v230 = vadd.f32 %v135, %v229
  %v231 = vpop.f32.mrf.mxu0
  %232 = vdwg.mxu0
  %v233 = vtanh.pop %v203
  %v234 = vtanh.pop %v206
  %v235 = vtanh.pop %v211
  %v236 = vtanh.pop %v214
  %v237 = vtanh.pop %v219
  %v238 = vtanh.pop %v222
  %v239 = vtanh.pop %v227
  %v240 = vtanh.pop %v230
  %v241 = vpack.c.bf16 %v234, %v233
  %v242 = vpack.c.bf16 %v236, %v235
  %v243 = vpack.c.bf16 %v238, %v237
  %v244 = vpack.c.bf16 %v240, %v239
  %v245 = vld [vmem:[%s1 + $0x18] sm:$0xf]
  %v246 = vld [vmem:[%s1 + $0x1c] sm:$0xf]
  %v247 = vld [vmem:[%s1 + $0x20] sm:$0xf]
  %v248 = vld [vmem:[%s1 + $0x24] sm:$0xf]
  %v249 = vld [vmem:[%s1 + $0x28] sm:$0xf]
  %v250 = vlaneseq
  %v251 = vshrl.u32 %v250, 7
  %v252 = vsub.s32 2, %v251
  %v253 = vrot.slane %v15, %v252
  %v259 = vunpack.c.l.b16 %v245
  %v260 = vunpack.c.l.b16 %v246
  %v261 = vunpack.c.l.b16 %v247
  %v262 = vunpack.c.l.b16 %v248
  %v263 = vunpack.c.l.b16 %v249
  %v264 = vpack.c.b16 %v260, %v259
  %v265 = vpack.c.b16 %v262, %v261
  %v266 = vpack.c.b16 %v263, %v263
  %v270 = vsel %vm151, %v241, 0
  %v273 = vsel %vm151, %v242, 0
  %v276 = vsel %vm151, %v243, 0
  %v279 = vsel %vm151, %v244, 0
  %v282 = vsel %vm164, %v266, 0
  %284 = vmatprep.subr.bf16.mxu0 0
  %285 = vmatpush1.bf16.msra.mxu0 0
  %286 = vmatprep.subr.bf16.mxu0 0
  %287 = vmatpush1.bf16.msra.mxu0 0
  %288 = vmatprep.subr.bf16.mxu0 0
  %289 = vmatpush1.bf16.msra.mxu0 0
  %290 = vmatprep.subr.bf16.mxu0 0
  %291 = vmatpush1.bf16.msra.mxu0 0
  %292 = vmatprep.subr.bf16.mxu0 0
  %293 = vmatpush1.bf16.msra.mxu0 0
  %294 = vmatprep.subr.bf16.mxu0 0
  %295 = vmatpush1.bf16.msra.mxu0 %v282
  %296 = vmatprep.subr.bf16.mxu0 0
  %297 = vmatpush1.bf16.msra.mxu0 %v265
  %298 = vmatprep.subr.bf16.mxu0 0
  %299 = vmatpush1.bf16.msra.mxu0 %v264
  %300 = vmatprep.subr.bf16.mxu0 0
  %301 = vmatpush2.bf16.msra.mxu0 0
  %302 = vmatprep.subr.bf16.mxu0 0
  %303 = vmatpush2.bf16.msra.mxu0 0
  %304 = vmatprep.subr.bf16.mxu0 0
  %305 = vmatpush2.bf16.msra.mxu0 0
  %306 = vmatprep.subr.bf16.mxu0 0
  %307 = vmatpush2.bf16.msra.mxu0 0
  %308 = vmatprep.subr.bf16.mxu0 0
  %309 = vmatpush2.bf16.msra.mxu0 0
  %310 = vmatprep.subr.bf16.mxu0 0
  %311 = vmatpush2.bf16.msra.mxu0 0
  %312 = vmatprep.subr.bf16.mxu0 0
  %313 = vmatpush2.bf16.msra.mxu0 0
  %314 = vmatprep.subr.bf16.mxu0 0
  %315 = vmatpush2.bf16.msra.mxu0 0
  %316 = vmatprep.mubr.bf16.mxu0 0
  %317 = vmatmul.mubr.bf16.gmra.mxu0 %v270
  %v318 = vpop.f32.mrf.mxu0
  %v319 = vadd.f32 %v253, %v318
  %v320 = vpop.f32.mrf.mxu0
  %v321 = vpop.f32.mrf.mxu0
  %v322 = vadd.f32 %v253, %v321
  %v323 = vpop.f32.mrf.mxu0
  %324 = vmatprep.mubr.bf16.mxu0 0
  %325 = vmatmul.mubr.bf16.gmra.mxu0 %v273
  %v326 = vpop.f32.mrf.mxu0
  %v327 = vadd.f32 %v253, %v326
  %v328 = vpop.f32.mrf.mxu0
  %v329 = vpop.f32.mrf.mxu0
  %v330 = vadd.f32 %v253, %v329
  %v331 = vpop.f32.mrf.mxu0
  %332 = vmatprep.mubr.bf16.mxu0 0
  %333 = vmatmul.mubr.bf16.gmra.mxu0 %v276
  %v334 = vpop.f32.mrf.mxu0
  %v335 = vadd.f32 %v253, %v334
  %v336 = vpop.f32.mrf.mxu0
  %v337 = vpop.f32.mrf.mxu0
  %v338 = vadd.f32 %v253, %v337
  %v339 = vpop.f32.mrf.mxu0
  %340 = vmatprep.mubr.bf16.mxu0 0
  %341 = vmatmul.mubr.bf16.gmra.mxu0 %v279
  %v342 = vpop.f32.mrf.mxu0
  %v343 = vadd.f32 %v253, %v342
  %v344 = vpop.f32.mrf.mxu0
  %v345 = vpop.f32.mrf.mxu0
  %v346 = vadd.f32 %v253, %v345
  %v347 = vpop.f32.mrf.mxu0
  %348 = vdwg.mxu0
  %v349 = vtanh.pop %v319
  %v350 = vtanh.pop %v322
  %v351 = vtanh.pop %v327
  %v352 = vtanh.pop %v330
  %v353 = vtanh.pop %v335
  %v354 = vtanh.pop %v338
  %v355 = vtanh.pop %v343
  %v356 = vtanh.pop %v346
  %v357 = vpack.c.bf16 %v350, %v349
  %v358 = vpack.c.bf16 %v352, %v351
  %v359 = vpack.c.bf16 %v354, %v353
  %v360 = vpack.c.bf16 %v356, %v355
  %v361 = vld [vmem:[%s1 + $0x2c] sm:$0xf]
  %v362 = vld [vmem:[%s1 + $0x30] sm:$0xf]
  %v363 = vld [vmem:[%s1 + $0x34] sm:$0xf]
  %v364 = vld [vmem:[%s1 + $0x38] sm:$0xf]
  %v365 = vld [vmem:[%s1 + $0x3c] sm:$0xf]
  %v366 = vlaneseq
  %v367 = vshrl.u32 %v366, 7
  %v368 = vsub.s32 3, %v367
  %v369 = vrot.slane %v15, %v368
  %v375 = vunpack.c.l.b16 %v361
  %v376 = vunpack.c.l.b16 %v362
  %v377 = vunpack.c.l.b16 %v363
  %v378 = vunpack.c.l.b16 %v364
  %v379 = vunpack.c.l.b16 %v365
  %v380 = vpack.c.b16 %v376, %v375
  %v381 = vpack.c.b16 %v378, %v377
  %v382 = vpack.c.b16 %v379, %v379
  %v386 = vsel %vm151, %v357, 0
  %v389 = vsel %vm151, %v358, 0
  %v392 = vsel %vm151, %v359, 0
  %v395 = vsel %vm151, %v360, 0
  %v398 = vsel %vm164, %v382, 0
  %400 = vmatprep.subr.bf16.mxu0 0
  %401 = vmatpush1.bf16.msra.mxu0 0
  %402 = vmatprep.subr.bf16.mxu0 0
  %403 = vmatpush1.bf16.msra.mxu0 0
  %404 = vmatprep.subr.bf16.mxu0 0
  %405 = vmatpush1.bf16.msra.mxu0 0
  %406 = vmatprep.subr.bf16.mxu0 0
  %407 = vmatpush1.bf16.msra.mxu0 0
  %408 = vmatprep.subr.bf16.mxu0 0
  %409 = vmatpush1.bf16.msra.mxu0 0
  %410 = vmatprep.subr.bf16.mxu0 0
  %411 = vmatpush1.bf16.msra.mxu0 %v398
  %412 = vmatprep.subr.bf16.mxu0 0
  %413 = vmatpush1.bf16.msra.mxu0 %v381
  %414 = vmatprep.subr.bf16.mxu0 0
  %415 = vmatpush1.bf16.msra.mxu0 %v380
  %416 = vmatprep.subr.bf16.mxu0 0
  %417 = vmatpush2.bf16.msra.mxu0 0
  %418 = vmatprep.subr.bf16.mxu0 0
  %419 = vmatpush2.bf16.msra.mxu0 0
  %420 = vmatprep.subr.bf16.mxu0 0
  %421 = vmatpush2.bf16.msra.mxu0 0
  %422 = vmatprep.subr.bf16.mxu0 0
  %423 = vmatpush2.bf16.msra.mxu0 0
  %424 = vmatprep.subr.bf16.mxu0 0
  %425 = vmatpush2.bf16.msra.mxu0 0
  %426 = vmatprep.subr.bf16.mxu0 0
  %427 = vmatpush2.bf16.msra.mxu0 0
  %428 = vmatprep.subr.bf16.mxu0 0
  %429 = vmatpush2.bf16.msra.mxu0 0
  %430 = vmatprep.subr.bf16.mxu0 0
  %431 = vmatpush2.bf16.msra.mxu0 0
  %432 = vmatprep.mubr.bf16.mxu0 0
  %433 = vmatmul.mubr.bf16.gmra.mxu0 %v386
  %v434 = vpop.f32.mrf.mxu0
  %v435 = vadd.f32 %v369, %v434
  %v436 = vpop.f32.mrf.mxu0
  %v437 = vpop.f32.mrf.mxu0
  %v438 = vadd.f32 %v369, %v437
  %v439 = vpop.f32.mrf.mxu0
  %440 = vmatprep.mubr.bf16.mxu0 0
  %441 = vmatmul.mubr.bf16.gmra.mxu0 %v389
  %v442 = vpop.f32.mrf.mxu0
  %v443 = vadd.f32 %v369, %v442
  %v444 = vpop.f32.mrf.mxu0
  %v445 = vpop.f32.mrf.mxu0
  %v446 = vadd.f32 %v369, %v445
  %v447 = vpop.f32.mrf.mxu0
  %448 = vmatprep.mubr.bf16.mxu0 0
  %449 = vmatmul.mubr.bf16.gmra.mxu0 %v392
  %v450 = vpop.f32.mrf.mxu0
  %v451 = vadd.f32 %v369, %v450
  %v452 = vpop.f32.mrf.mxu0
  %v453 = vpop.f32.mrf.mxu0
  %v454 = vadd.f32 %v369, %v453
  %v455 = vpop.f32.mrf.mxu0
  %456 = vmatprep.mubr.bf16.mxu0 0
  %457 = vmatmul.mubr.bf16.gmra.mxu0 %v395
  %v458 = vpop.f32.mrf.mxu0
  %v459 = vadd.f32 %v369, %v458
  %v460 = vpop.f32.mrf.mxu0
  %v461 = vpop.f32.mrf.mxu0
  %v462 = vadd.f32 %v369, %v461
  %v463 = vpop.f32.mrf.mxu0
  %464 = vdwg.mxu0
  %v465 = vtanh.pop %v435
  %v466 = vtanh.pop %v438
  %v467 = vtanh.pop %v443
  %v468 = vtanh.pop %v446
  %v469 = vtanh.pop %v451
  %v470 = vtanh.pop %v454
  %v471 = vtanh.pop %v459
  %v472 = vtanh.pop %v462
  %v473 = vpack.c.bf16 %v466, %v465
  %v474 = vpack.c.bf16 %v468, %v467
  %v475 = vpack.c.bf16 %v470, %v469
  %v476 = vpack.c.bf16 %v472, %v471
  %v477 = vld [vmem:[%s1 + $0x40] sm:$0xf]
  %v478 = vld [vmem:[%s1 + $0x44] sm:$0xf]
  %v479 = vld [vmem:[%s1 + $0x48] sm:$0xf]
  %v480 = vld [vmem:[%s1 + $0x4c] sm:$0xf]
  %v481 = vld [vmem:[%s1 + $0x50] sm:$0xf]
  %v482 = vlaneseq
  %v483 = vshrl.u32 %v482, 7
  %v484 = vsub.s32 4, %v483
  %v485 = vrot.slane %v15, %v484
  %v491 = vunpack.c.l.b16 %v477
  %v492 = vunpack.c.l.b16 %v478
  %v493 = vunpack.c.l.b16 %v479
  %v494 = vunpack.c.l.b16 %v480
  %v495 = vunpack.c.l.b16 %v481
  %v496 = vpack.c.b16 %v492, %v491
  %v497 = vpack.c.b16 %v494, %v493
  %v498 = vpack.c.b16 %v495, %v495
  %v502 = vsel %vm151, %v473, 0
  %v505 = vsel %vm151, %v474, 0
  %v508 = vsel %vm151, %v475, 0
  %v511 = vsel %vm151, %v476, 0
  %v514 = vsel %vm164, %v498, 0
  %516 = vmatprep.subr.bf16.mxu0 0
  %517 = vmatpush1.bf16.msra.mxu0 0
  %518 = vmatprep.subr.bf16.mxu0 0
  %519 = vmatpush1.bf16.msra.mxu0 0
  %520 = vmatprep.subr.bf16.mxu0 0
  %521 = vmatpush1.bf16.msra.mxu0 0
  %522 = vmatprep.subr.bf16.mxu0 0
  %523 = vmatpush1.bf16.msra.mxu0 0
  %524 = vmatprep.subr.bf16.mxu0 0
  %525 = vmatpush1.bf16.msra.mxu0 0
  %526 = vmatprep.subr.bf16.mxu0 0
  %527 = vmatpush1.bf16.msra.mxu0 %v514
  %528 = vmatprep.subr.bf16.mxu0 0
  %529 = vmatpush1.bf16.msra.mxu0 %v497
  %530 = vmatprep.subr.bf16.mxu0 0
  %531 = vmatpush1.bf16.msra.mxu0 %v496
  %532 = vmatprep.subr.bf16.mxu0 0
  %533 = vmatpush2.bf16.msra.mxu0 0
  %534 = vmatprep.subr.bf16.mxu0 0
  %535 = vmatpush2.bf16.msra.mxu0 0
  %536 = vmatprep.subr.bf16.mxu0 0
  %537 = vmatpush2.bf16.msra.mxu0 0
  %538 = vmatprep.subr.bf16.mxu0 0
  %539 = vmatpush2.bf16.msra.mxu0 0
  %540 = vmatprep.subr.bf16.mxu0 0
  %541 = vmatpush2.bf16.msra.mxu0 0
  %542 = vmatprep.subr.bf16.mxu0 0
  %543 = vmatpush2.bf16.msra.mxu0 0
  %544 = vmatprep.subr.bf16.mxu0 0
  %545 = vmatpush2.bf16.msra.mxu0 0
  %546 = vmatprep.subr.bf16.mxu0 0
  %547 = vmatpush2.bf16.msra.mxu0 0
  %548 = vmatprep.mubr.bf16.mxu0 0
  %549 = vmatmul.mubr.bf16.gmra.mxu0 %v502
  %v550 = vpop.f32.mrf.mxu0
  %v551 = vadd.f32 %v485, %v550
  %v552 = vpop.f32.mrf.mxu0
  %v553 = vpop.f32.mrf.mxu0
  %v554 = vadd.f32 %v485, %v553
  %v555 = vpop.f32.mrf.mxu0
  %556 = vmatprep.mubr.bf16.mxu0 0
  %557 = vmatmul.mubr.bf16.gmra.mxu0 %v505
  %v558 = vpop.f32.mrf.mxu0
  %v559 = vadd.f32 %v485, %v558
  %v560 = vpop.f32.mrf.mxu0
  %v561 = vpop.f32.mrf.mxu0
  %v562 = vadd.f32 %v485, %v561
  %v563 = vpop.f32.mrf.mxu0
  %564 = vmatprep.mubr.bf16.mxu0 0
  %565 = vmatmul.mubr.bf16.gmra.mxu0 %v508
  %v566 = vpop.f32.mrf.mxu0
  %v567 = vadd.f32 %v485, %v566
  %v568 = vpop.f32.mrf.mxu0
  %v569 = vpop.f32.mrf.mxu0
  %v570 = vadd.f32 %v485, %v569
  %v571 = vpop.f32.mrf.mxu0
  %572 = vmatprep.mubr.bf16.mxu0 0
  %573 = vmatmul.mubr.bf16.gmra.mxu0 %v511
  %v574 = vpop.f32.mrf.mxu0
  %v575 = vadd.f32 %v485, %v574
  %v576 = vpop.f32.mrf.mxu0
  %v577 = vpop.f32.mrf.mxu0
  %v578 = vadd.f32 %v485, %v577
  %v579 = vpop.f32.mrf.mxu0
  %580 = vdwg.mxu0
  %v581 = vtanh.pop %v551
  %v582 = vtanh.pop %v554
  %v583 = vtanh.pop %v559
  %v584 = vtanh.pop %v562
  %v585 = vtanh.pop %v567
  %v586 = vtanh.pop %v570
  %v587 = vtanh.pop %v575
  %v588 = vtanh.pop %v578
  %v589 = vpack.c.bf16 %v582, %v581
  %v590 = vpack.c.bf16 %v584, %v583
  %v591 = vpack.c.bf16 %v586, %v585
  %v592 = vpack.c.bf16 %v588, %v587
  %v593 = vld [vmem:[%s1 + $0x54] sm:$0xf]
  %v594 = vld [vmem:[%s1 + $0x58] sm:$0xf]
  %v595 = vld [vmem:[%s1 + $0x5c] sm:$0xf]
  %v596 = vld [vmem:[%s1 + $0x60] sm:$0xf]
  %v597 = vld [vmem:[%s1 + $0x64] sm:$0xf]
  %v598 = vlaneseq
  %v599 = vshrl.u32 %v598, 7
  %v600 = vsub.s32 5, %v599
  %v601 = vrot.slane %v15, %v600
  %v607 = vunpack.c.l.b16 %v593
  %v608 = vunpack.c.l.b16 %v594
  %v609 = vunpack.c.l.b16 %v595
  %v610 = vunpack.c.l.b16 %v596
  %v611 = vunpack.c.l.b16 %v597
  %v612 = vpack.c.b16 %v608, %v607
  %v613 = vpack.c.b16 %v610, %v609
  %v614 = vpack.c.b16 %v611, %v611
  %v618 = vsel %vm151, %v589, 0
  %v621 = vsel %vm151, %v590, 0
  %v624 = vsel %vm151, %v591, 0
  %v627 = vsel %vm151, %v592, 0
  %v630 = vsel %vm164, %v614, 0
  %632 = vmatprep.subr.bf16.mxu0 0
  %633 = vmatpush1.bf16.msra.mxu0 0
  %634 = vmatprep.subr.bf16.mxu0 0
  %635 = vmatpush1.bf16.msra.mxu0 0
  %636 = vmatprep.subr.bf16.mxu0 0
  %637 = vmatpush1.bf16.msra.mxu0 0
  %638 = vmatprep.subr.bf16.mxu0 0
  %639 = vmatpush1.bf16.msra.mxu0 0
  %640 = vmatprep.subr.bf16.mxu0 0
  %641 = vmatpush1.bf16.msra.mxu0 0
  %642 = vmatprep.subr.bf16.mxu0 0
  %643 = vmatpush1.bf16.msra.mxu0 %v630
  %644 = vmatprep.subr.bf16.mxu0 0
  %645 = vmatpush1.bf16.msra.mxu0 %v613
  %646 = vmatprep.subr.bf16.mxu0 0
  %647 = vmatpush1.bf16.msra.mxu0 %v612
  %648 = vmatprep.subr.bf16.mxu0 0
  %649 = vmatpush2.bf16.msra.mxu0 0
  %650 = vmatprep.subr.bf16.mxu0 0
  %651 = vmatpush2.bf16.msra.mxu0 0
  %652 = vmatprep.subr.bf16.mxu0 0
  %653 = vmatpush2.bf16.msra.mxu0 0
  %654 = vmatprep.subr.bf16.mxu0 0
  %655 = vmatpush2.bf16.msra.mxu0 0
  %656 = vmatprep.subr.bf16.mxu0 0
  %657 = vmatpush2.bf16.msra.mxu0 0
  %658 = vmatprep.subr.bf16.mxu0 0
  %659 = vmatpush2.bf16.msra.mxu0 0
  %660 = vmatprep.subr.bf16.mxu0 0
  %661 = vmatpush2.bf16.msra.mxu0 0
  %662 = vmatprep.subr.bf16.mxu0 0
  %663 = vmatpush2.bf16.msra.mxu0 0
  %664 = vmatprep.mubr.bf16.mxu0 0
  %665 = vmatmul.mubr.bf16.gmra.mxu0 %v618
  %v666 = vpop.f32.mrf.mxu0
  %v667 = vadd.f32 %v601, %v666
  %v668 = vpop.f32.mrf.mxu0
  %v669 = vpop.f32.mrf.mxu0
  %v670 = vadd.f32 %v601, %v669
  %v671 = vpop.f32.mrf.mxu0
  %672 = vmatprep.mubr.bf16.mxu0 0
  %673 = vmatmul.mubr.bf16.gmra.mxu0 %v621
  %v674 = vpop.f32.mrf.mxu0
  %v675 = vadd.f32 %v601, %v674
  %v676 = vpop.f32.mrf.mxu0
  %v677 = vpop.f32.mrf.mxu0
  %v678 = vadd.f32 %v601, %v677
  %v679 = vpop.f32.mrf.mxu0
  %680 = vmatprep.mubr.bf16.mxu0 0
  %681 = vmatmul.mubr.bf16.gmra.mxu0 %v624
  %v682 = vpop.f32.mrf.mxu0
  %v683 = vadd.f32 %v601, %v682
  %v684 = vpop.f32.mrf.mxu0
  %v685 = vpop.f32.mrf.mxu0
  %v686 = vadd.f32 %v601, %v685
  %v687 = vpop.f32.mrf.mxu0
  %688 = vmatprep.mubr.bf16.mxu0 0
  %689 = vmatmul.mubr.bf16.gmra.mxu0 %v627
  %v690 = vpop.f32.mrf.mxu0
  %v691 = vadd.f32 %v601, %v690
  %v692 = vpop.f32.mrf.mxu0
  %v693 = vpop.f32.mrf.mxu0
  %v694 = vadd.f32 %v601, %v693
  %v695 = vpop.f32.mrf.mxu0
  %696 = vdwg.mxu0
  %vm697 = vcmask 15360
  %698 = vst.msk [vmem:[%s3] sm:$0xff] %vm697, %v667
  %699 = vst.msk [vmem:[%s3 + $0x8] sm:$0xff] %vm697, %v670
  %700 = vst.msk [vmem:[%s3 + $0x10] sm:$0xff] %vm697, %v675
  %701 = vst.msk [vmem:[%s3 + $0x18] sm:$0xff] %vm697, %v678
  %702 = vst.msk [vmem:[%s3 + $0x20] sm:$0xff] %vm697, %v683
  %703 = vst.msk [vmem:[%s3 + $0x28] sm:$0xff] %vm697, %v686
  %704 = vst.msk [vmem:[%s3 + $0x30] sm:$0xff] %vm697, %v691
  %705 = vst.msk [vmem:[%s3 + $0x38] sm:$0xff] %vm697, %v694
  // Predicated region
  $region14: #{net_forward.1} parent=0 // pred_check
    _
  $region15: #{net_forward.1} parent=0 // pred_check_branch
    %707 = sbr.rel (0) target = $region17
  $region16: #{net_forward.1} parent=0 // pred_region
    _
  $region17: #{net_forward.1} parent=0 // pred_fallthru
    _
  // Predicated region
  $region18: #{net_forward.1} parent=0 // pred_check
    _
  $region19: #{net_forward.1} parent=0 // pred_check_branch
    %709 = sbr.rel (0) target = $region21
  $region20: #{net_forward.1} parent=0 // pred_region
    _
  $region21: #{net_forward.1} parent=0 // pred_fallthru
    _

</llo_original>
